<compile_context>
chip_gen: v5e
topology: v5e:2x2
jax: 0.10.0
libtpu: 0.0.40
codegen_flags: <defaults>
</compile_context>

<pallas_src>
import functools

import jax
import jax.numpy as jnp
import numpy as np
from jax.experimental import pallas as pl
from jax.experimental.pallas import tpu as pltpu


def _round_up(a, b):
    return (a + b - 1) // b * b


def _encoder_kernel(x_ref, w_ref, b_ref, o_ref, *, no_imgnorm, eps,
                    compute_dtype, approx_recip):
    # x_ref: (tm, K)   w_ref: (K, E)   b_ref: (1, E)   o_ref: (tm, E)
    x = x_ref[...]
    if compute_dtype is not None and x.dtype != compute_dtype:
        x = x.astype(compute_dtype)
    feats = jnp.dot(x, w_ref[...], preferred_element_type=jnp.float32)
    feats = feats + b_ref[...].astype(jnp.float32)  # broadcast bias over rows
    if not no_imgnorm:
        # l2norm: X / (sqrt(sum(X^2, dim=-1, keepdim=True)) + eps)
        norm = jnp.sqrt(jnp.sum(feats * feats, axis=-1, keepdims=True)) + eps
        feats = feats * pl.reciprocal(norm, approx=approx_recip)
    o_ref[...] = feats.astype(o_ref.dtype)


def encoder_image_precomp(images, weight_t, bias, *, no_imgnorm=False, eps=1e-8,
                          row_tile=256, compute_dtype=None,
                          approx_reciprocal=True):
    """images: (..., img_dim); weight_t: (img_dim, embed_size); bias: (embed_size,).

    compute_dtype: optional MXU operand dtype (e.g. jnp.bfloat16 on v6e/v7x);
    accumulation, bias add and the norm stay in float32.
    """
    img_dim = images.shape[-1]
    embed_size = weight_t.shape[-1]
    lead_shape = images.shape[:-1]

    x = images.reshape(-1, img_dim)
    M = x.shape[0]

    # Lane-dense output: pad the embed axis to a multiple of 128 with zero
    # columns (zero features contribute nothing to the L2 norm, so this is
    # exact) and slice afterwards. Production embed sizes (e.g. 1024) need no pad.
    E_pad = _round_up(embed_size, 128)
    if E_pad != embed_size:
        weight_t = jnp.pad(weight_t, ((0, 0), (0, E_pad - embed_size)))
        bias = jnp.pad(bias, (0, E_pad - embed_size))

    if compute_dtype is not None:
        weight_t = weight_t.astype(compute_dtype)

    b2d = bias.reshape(1, E_pad)

    # Row tile selection: big (MXU-filling), 8-aligned, capped so the grid has
    # at least 2 steps when there are enough rows (v7x: 2 TensorCores) and no
    # larger than the (aligned) row count. No row padding is done: the grid is
    # pl.cdiv(M, tm) and Pallas masks the ragged last block's stores.
    ROW_ALIGN = 8
    rows_aligned = _round_up(M, ROW_ALIGN)
    tm = min(row_tile, rows_aligned)
    if rows_aligned >= 2 * ROW_ALIGN:
        tm = min(tm, _round_up(pl.cdiv(M, 2), ROW_ALIGN))
    tm = max(ROW_ALIGN, _round_up(tm, ROW_ALIGN))
    grid = (pl.cdiv(M, tm),)

    kernel = functools.partial(
        _encoder_kernel, no_imgnorm=no_imgnorm, eps=eps,
        compute_dtype=compute_dtype, approx_recip=approx_reciprocal)

    def build(single_buffer_consts):
        # Weight and bias have constant index maps; single-buffer them so the
        # (potentially large) weight does not burn 2x VMEM.
        const_kw = (dict(pipeline_mode=pl.Buffered(1))
                    if single_buffer_consts else {})
        return pl.pallas_call(
            kernel,
            out_shape=jax.ShapeDtypeStruct((M, E_pad), images.dtype),
            grid_spec=pltpu.PrefetchScalarGridSpec(
                num_scalar_prefetch=0,
                grid=grid,
                in_specs=[
                    pl.BlockSpec((tm, img_dim), lambda i: (i, 0)),
                    pl.BlockSpec((img_dim, E_pad), lambda i: (0, 0), **const_kw),
                    pl.BlockSpec((1, E_pad), lambda i: (0, 0), **const_kw),
                ],
                out_specs=pl.BlockSpec((tm, E_pad), lambda i: (i, 0)),
            ),
            compiler_params=pltpu.CompilerParams(
                dimension_semantics=("parallel",),
                vmem_limit_bytes=64 * 1024 * 1024,
            ),
        )

    try:
        out = jax.block_until_ready(build(True)(x, weight_t, b2d))
    except Exception:
        # Defensive fallback: if this Pallas version rejects Buffered(1),
        # default double-buffering is functionally identical (just one extra
        # VMEM buffer for the constant-index weight/bias).
        out = build(False)(x, weight_t, b2d)

    if E_pad != embed_size:
        out = out[:, :embed_size]
    return out.reshape(*lead_shape, embed_size)


def init_params(img_dim, embed_size, key):
    """Xavier-uniform weight (as in the torch module), zero bias."""
    r = np.sqrt(6.0) / np.sqrt(img_dim + embed_size)
    # torch stores fc.weight as (embed_size, img_dim); we keep it transposed.
    w_t = jax.random.uniform(key, (img_dim, embed_size), jnp.float32, -r, r)
    b = jnp.zeros((embed_size,), jnp.float32)
    return w_t, b


def _reference(images, weight_t, bias, no_imgnorm=False, eps=1e-8):
    feats = jnp.einsum("...k,ke->...e", images, weight_t) + bias
    if not no_imgnorm:
        norm = jnp.sqrt(jnp.sum(feats * feats, axis=-1, keepdims=True)) + eps
        feats = feats / norm
    return feats


if __name__ == "__main__":
    key = jax.random.PRNGKey(0)
    k_img, k_w = jax.random.split(key)

    batch, n_regions, img_dim, embed_size = 2, 8, 32, 32
    images = jax.random.normal(k_img, (batch, n_regions, img_dim), jnp.float32)
    weight_t, bias = init_params(img_dim, embed_size, k_w)

    ref = _reference(images, weight_t, bias, no_imgnorm=False)

    # Exact path: f32 MXU operands, exact reciprocal.
    out_f32 = encoder_image_precomp(images, weight_t, bias, no_imgnorm=False,
                                    compute_dtype=None, approx_reciprocal=False)
    out_f32 = jax.block_until_ready(out_f32)
    np.testing.assert_allclose(np.asarray(out_f32), np.asarray(ref),
                               rtol=1e-5, atol=1e-5)

    # Fast path: bf16 MXU operands (f32 accumulation), approx reciprocal.
    out_bf16 = encoder_image_precomp(images, weight_t, bias, no_imgnorm=False,
                                     compute_dtype=jnp.bfloat16,
                                     approx_reciprocal=True)
    out_bf16 = jax.block_until_ready(out_bf16)
    np.testing.assert_allclose(np.asarray(out_bf16), np.asarray(ref),
                               rtol=5e-2, atol=5e-2)

    print("KERNEL_OK")
</pallas_src>

<mosaic_0001>
module attributes {stable_mosaic.version = 11 : i64} {
  func.func @_encoder_kernel(%arg0: i32, %arg1: memref<8x32xf32, #tpu.memory_space<vmem>>, %arg2: memref<32x128xf32, #tpu.memory_space<vmem>>, %arg3: memref<1x128xf32, #tpu.memory_space<vmem>>, %arg4: memref<8x128xf32, #tpu.memory_space<vmem>>) attributes {dimension_semantics = [#tpu.dimension_semantics<parallel>], iteration_bounds = array<i64: 2>, scalar_prefetch = 0 : i64, scratch_operands = 0 : i64, tpu.core_type = #tpu.core_type<tc>, window_params = [{transform_indices = @transform_0, window_bounds = array<i64: 8, 32>}, {pipeline_mode = #tpu.pipeline_mode<synchronous>, transform_indices = @transform_1, window_bounds = array<i64: 32, 128>}, {pipeline_mode = #tpu.pipeline_mode<synchronous>, transform_indices = @transform_2, window_bounds = array<i64: 1, 128>}, {transform_indices = @transform_3, window_bounds = array<i64: 8, 128>}]} {
    %c0 = arith.constant 0 : index
    %c0_0 = arith.constant 0 : index
    %0 = vector.load %arg1[%c0, %c0_0] : memref<8x32xf32, #tpu.memory_space<vmem>>, vector<8x32xf32>
    %c0_1 = arith.constant 0 : index
    %c0_2 = arith.constant 0 : index
    %1 = vector.load %arg2[%c0_1, %c0_2] : memref<32x128xf32, #tpu.memory_space<vmem>>, vector<32x128xf32>
    %cst = arith.constant dense<0.000000e+00> : vector<8x128xf32>
    %2 = tpu.matmul %0, %1, %cst {dimension_numbers = #tpu.dot_dimension_numbers<[1], [0], [0], [1], [0, 0, 1, 1], [], []>} : vector<8x32xf32>, vector<32x128xf32>, vector<8x128xf32> -> vector<8x128xf32>
    %c0_3 = arith.constant 0 : index
    %c0_4 = arith.constant 0 : index
    %3 = vector.load %arg3[%c0_3, %c0_4] : memref<1x128xf32, #tpu.memory_space<vmem>>, vector<1x128xf32>
    %4 = vector.broadcast %3 : vector<1x128xf32> to vector<8x128xf32>
    %5 = arith.addf %2, %4 : vector<8x128xf32>
    %6 = arith.mulf %5, %5 : vector<8x128xf32>
    %cst_5 = arith.constant dense<0.000000e+00> : vector<8xf32>
    %7 = vector.multi_reduction <add>, %6, %cst_5 [1] : vector<8x128xf32> to vector<8xf32>
    %8 = vector.shape_cast %7 : vector<8xf32> to vector<8x1xf32>
    %9 = math.sqrt %8 : vector<8x1xf32>
    %cst_6 = arith.constant 9.99999993E-9 : f32
    %10 = vector.broadcast %cst_6 : f32 to vector<8x1xf32>
    %11 = arith.addf %9, %10 : vector<8x1xf32>
    %12 = tpu.reciprocal %11 : vector<8x1xf32> -> vector<8x1xf32>
    %13 = vector.broadcast %12 : vector<8x1xf32> to vector<8x128xf32>
    %14 = arith.mulf %5, %13 : vector<8x128xf32>
    %c0_7 = arith.constant 0 : index
    %c0_8 = arith.constant 0 : index
    %15 = vector.load %arg4[%c0_7, %c0_8] : memref<8x128xf32, #tpu.memory_space<vmem>>, vector<8x128xf32>
    tpu.vector_store %arg4[%c0_7, %c0_8], %14 {strides = array<i32>} : memref<8x128xf32, #tpu.memory_space<vmem>>, vector<8x128xf32>,
    return
  }
  func.func @transform_0(%arg0: i32) -> (i32, i32) {
    %c0_i32 = arith.constant 0 : i32
    %c0_i32_0 = arith.constant 0 : i32
    return %arg0, %c0_i32 : i32, i32
  }
  func.func @transform_1(%arg0: i32) -> (i32, i32) {
    %c0_i32 = arith.constant 0 : i32
    %c0_i32_0 = arith.constant 0 : i32
    %c0_i32_1 = arith.constant 0 : i32
    return %c0_i32, %c0_i32_0 : i32, i32
  }
  func.func @transform_2(%arg0: i32) -> (i32, i32) {
    %c0_i32 = arith.constant 0 : i32
    %c0_i32_0 = arith.constant 0 : i32
    %c0_i32_1 = arith.constant 0 : i32
    return %c0_i32, %c0_i32_0 : i32, i32
  }
  func.func @transform_3(%arg0: i32) -> (i32, i32) {
    %c0_i32 = arith.constant 0 : i32
    %c0_i32_0 = arith.constant 0 : i32
    return %arg0, %c0_i32 : i32, i32
  }
}

module attributes {stable_mosaic.version = 11 : i64} {
  func.func @_encoder_kernel(%arg0: i32, %arg1: memref<8x32xf32, #tpu.memory_space<vmem>>, %arg2: memref<32x128xf32, #tpu.memory_space<vmem>>, %arg3: memref<1x128xf32, #tpu.memory_space<vmem>>, %arg4: memref<8x128xf32, #tpu.memory_space<vmem>>) attributes {dimension_semantics = [#tpu.dimension_semantics<parallel>], iteration_bounds = array<i64: 2>, scalar_prefetch = 0 : i64, scratch_operands = 0 : i64, tpu.core_type = #tpu.core_type<tc>, window_params = [{transform_indices = @transform_0, window_bounds = array<i64: 8, 32>}, {pipeline_mode = #tpu.pipeline_mode<synchronous>, transform_indices = @transform_1, window_bounds = array<i64: 32, 128>}, {pipeline_mode = #tpu.pipeline_mode<synchronous>, transform_indices = @transform_2, window_bounds = array<i64: 1, 128>}, {transform_indices = @transform_3, window_bounds = array<i64: 8, 128>}]} {
    %c0 = arith.constant 0 : index
    %c0_0 = arith.constant 0 : index
    %0 = vector.load %arg1[%c0, %c0_0] : memref<8x32xf32, #tpu.memory_space<vmem>>, vector<8x32xf32>
    %c0_1 = arith.constant 0 : index
    %c0_2 = arith.constant 0 : index
    %1 = vector.load %arg2[%c0_1, %c0_2] : memref<32x128xf32, #tpu.memory_space<vmem>>, vector<32x128xf32>
    %cst = arith.constant dense<0.000000e+00> : vector<8x128xf32>
    %2 = tpu.matmul %0, %1, %cst {dimension_numbers = #tpu.dot_dimension_numbers<[1], [0], [0], [1], [0, 0, 1, 1], [], []>} : vector<8x32xf32>, vector<32x128xf32>, vector<8x128xf32> -> vector<8x128xf32>
    %c0_3 = arith.constant 0 : index
    %c0_4 = arith.constant 0 : index
    %3 = vector.load %arg3[%c0_3, %c0_4] : memref<1x128xf32, #tpu.memory_space<vmem>>, vector<1x128xf32>
    %4 = vector.broadcast %3 : vector<1x128xf32> to vector<8x128xf32>
    %5 = arith.addf %2, %4 : vector<8x128xf32>
    %6 = arith.mulf %5, %5 : vector<8x128xf32>
    %cst_5 = arith.constant dense<0.000000e+00> : vector<8xf32>
    %7 = vector.multi_reduction <add>, %6, %cst_5 [1] : vector<8x128xf32> to vector<8xf32>
    %8 = vector.shape_cast %7 : vector<8xf32> to vector<8x1xf32>
    %9 = math.sqrt %8 : vector<8x1xf32>
    %cst_6 = arith.constant 9.99999993E-9 : f32
    %10 = vector.broadcast %cst_6 : f32 to vector<8x1xf32>
    %11 = arith.addf %9, %10 : vector<8x1xf32>
    %12 = tpu.reciprocal %11 : vector<8x1xf32> -> vector<8x1xf32>
    %13 = vector.broadcast %12 : vector<8x1xf32> to vector<8x128xf32>
    %14 = arith.mulf %5, %13 : vector<8x128xf32>
    %c0_7 = arith.constant 0 : index
    %c0_8 = arith.constant 0 : index
    %15 = vector.load %arg4[%c0_7, %c0_8] : memref<8x128xf32, #tpu.memory_space<vmem>>, vector<8x128xf32>
    tpu.vector_store %arg4[%c0_7, %c0_8], %14 {strides = array<i32>} : memref<8x128xf32, #tpu.memory_space<vmem>>, vector<8x128xf32>,
    return
  }
  func.func @transform_0(%arg0: i32) -> (i32, i32) {
    %c0_i32 = arith.constant 0 : i32
    %c0_i32_0 = arith.constant 0 : i32
    return %arg0, %c0_i32 : i32, i32
  }
  func.func @transform_1(%arg0: i32) -> (i32, i32) {
    %c0_i32 = arith.constant 0 : i32
    %c0_i32_0 = arith.constant 0 : i32
    %c0_i32_1 = arith.constant 0 : i32
    return %c0_i32, %c0_i32_0 : i32, i32
  }
  func.func @transform_2(%arg0: i32) -> (i32, i32) {
    %c0_i32 = arith.constant 0 : i32
    %c0_i32_0 = arith.constant 0 : i32
    %c0_i32_1 = arith.constant 0 : i32
    return %c0_i32, %c0_i32_0 : i32, i32
  }
  func.func @transform_3(%arg0: i32) -> (i32, i32) {
    %c0_i32 = arith.constant 0 : i32
    %c0_i32_0 = arith.constant 0 : i32
    return %arg0, %c0_i32 : i32, i32
  }
}

</mosaic_0001>

<llo_original>
// kernel: tpu_custom_call.1
$region0: #{tpu_custom_call.1}
  #allocation0 [shape = 'u32[]', space=smem, size = 0x4, offset = 0x4, fixed_abs, tag = 'smem constant byte address 0x4 - core index']
  #allocation1 [shape = 'u32[72,128]{1,0:T(1,128)}', space=vmem, size = 0x9000, scoped, tag = 'internal scratch']
  %s0 = inlined_call_operand.hbm [shape: f32[16,32], index: 0, kind: input, shape index: {}]
  %s1 = inlined_call_operand.hbm [shape: f32[32,128], index: 1, kind: input, shape index: {}]
  %s2 = inlined_call_operand.vmem [shape: f32[1,128], index: 2, kind: input, shape index: {}]
  %s3 = inlined_call_operand.hbm [shape: f32[16,128], index: 3, kind: output, shape index: {}]
  %s4 = sld [smem:[#allocation0]]
  $region53: #{tpu_custom_call.1} parent=0
    _
  %s6 = ssub.s32 1, %s4
  %s7 = scalar_select 0, %s6, %s4
  $region1: #{tpu_custom_call.1} parent=0
    #allocation2 [shape = 'u8[8192]{0}', space=vmem, size = 0x2000, scoped, tag = 'input window, operand 0']
    #allocation3 [shape = 's32[2]{0}', space=sflag, size = 0x8, scoped, tag = 'scoped memory for tpu_custom_call.1']
    #allocation4 [shape = 's32[2]{0}', space=sflag, size = 0x8, scoped, tag = 'scoped memory for tpu_custom_call.1']
    #allocation5 [shape = 'u8[16384]{0}', space=vmem, size = 0x4000, scoped, tag = 'input window, operand 1, single buffered']
    #allocation6 [shape = 's32[1]{0}', space=sflag, size = 0x4, scoped, tag = 'scoped memory for tpu_custom_call.1']
    #allocation7 [shape = 'u8[8192]{0}', space=vmem, size = 0x2000, scoped, tag = 'output window, operand 0']
    %8 = vsyncpa [#allocation3], 0
    %s9 = scalar_lea.sflag [#allocation3], 1
    %10 = vsyncpa %s9, 0
    %11 = vsyncpa [#allocation6], 0
    %12 = vsyncpa [#allocation4], 0
    %s13 = scalar_lea.sflag [#allocation4], 1
    %14 = vsyncpa %s13, 0
    loop: start=0, step=1, limit=4
    $region2: #{tpu_custom_call.1} parent=1 // loop_pre_header
      _
    $region3: #{tpu_custom_call.1} parent=1 // loop_header
      %s16 = sphi 0, %s20
      %p17 = scmp.ge.s32.totalorder %s16, 4
      %s26 = sphi 0, %s28
      %s29 = sphi 0, %s26
      %s30 = sphi 0, %s29
      %s46 = sphi 0, %s30
      %s50 = sphi 0, %s50
      %s52 = sphi 0, %s50
      %s53 = sphi 0, %s52
      %s67 = sphi 0, %s53
      %s71 = sphi 0, %s71
      %s73 = sphi 0, %s71
      %s74 = sphi 0, %s73
      %s88 = sphi 0, %s74
      %s94 = sphi 0, %s96
      %s97 = sphi 0, %s94
      %s98 = sphi 0, %s97
      %s114 = sphi 0, %s98
    $region4: #{tpu_custom_call.1} parent=1 // loop_header_branch
      %19 = sbr.rel (%p17) target = $region8
    $region5: #{tpu_custom_call.1} parent=1 // loop_body
      %s21 = ssub.s32 %s16, 1
      %s22 = ssub.s32 %s16, 2
      %s23 = sadd.s32 %s16, 1
      %s24 = ssub.s32 %s16, %s23
      %p25 = scmp.eq.s32.totalorder %s24, 0
      %s27 = sadd.s32 %s26, 1
      %s28 = scalar_select %p25, %s26, %s27
      %p31 = pneg %p25
      %p32 = scmp.eq.s32.totalorder %s16, 1
      %p33 = por %p31, %p32
      %p34 = scmp.ne.s32.totalorder %s26, %s29
      %p35 = scmp.eq.s32.totalorder %s16, 0
      %p36 = por %p34, %p35
      %p37 = scmp.ne.s32.totalorder %s26, %s29
      %p38 = scmp.eq.s32.totalorder %s21, 1
      %p39 = por %p37, %p38
      %p40 = scmp.ne.s32.totalorder %s29, %s30
      %p41 = scmp.eq.s32.totalorder %s21, 0
      %p42 = por %p40, %p41
      %p43 = scmp.ne.s32.totalorder %s29, %s30
      %p44 = scmp.eq.s32.totalorder %s22, 1
      %p45 = por %p43, %p44
      %p47 = scmp.ne.s32.totalorder %s30, %s46
      %p48 = scmp.eq.s32.totalorder %s22, 0
      %p49 = por %p47, %p48
      %s51 = sadd.s32 %s50, 1
      %p54 = scmp.eq.s32.totalorder %s16, 1
      %p55 = scmp.ne.s32.totalorder %s50, %s52
      %p56 = scmp.eq.s32.totalorder %s16, 0
      %p57 = por %p55, %p56
      %p58 = scmp.ne.s32.totalorder %s50, %s52
      %p59 = scmp.eq.s32.totalorder %s21, 1
      %p60 = por %p58, %p59
      %p61 = scmp.ne.s32.totalorder %s52, %s53
      %p62 = scmp.eq.s32.totalorder %s21, 0
      %p63 = por %p61, %p62
      %p64 = scmp.ne.s32.totalorder %s52, %s53
      %p65 = scmp.eq.s32.totalorder %s22, 1
      %p66 = por %p64, %p65
      %p68 = scmp.ne.s32.totalorder %s53, %s67
      %p69 = scmp.eq.s32.totalorder %s22, 0
      %p70 = por %p68, %p69
      %s72 = sadd.s32 %s71, 1
      %p75 = scmp.eq.s32.totalorder %s16, 1
      %p76 = scmp.ne.s32.totalorder %s71, %s73
      %p77 = scmp.eq.s32.totalorder %s16, 0
      %p78 = por %p76, %p77
      %p79 = scmp.ne.s32.totalorder %s71, %s73
      %p80 = scmp.eq.s32.totalorder %s21, 1
      %p81 = por %p79, %p80
      %p82 = scmp.ne.s32.totalorder %s73, %s74
      %p83 = scmp.eq.s32.totalorder %s21, 0
      %p84 = por %p82, %p83
      %p85 = scmp.ne.s32.totalorder %s73, %s74
      %p86 = scmp.eq.s32.totalorder %s22, 1
      %p87 = por %p85, %p86
      %p89 = scmp.ne.s32.totalorder %s74, %s88
      %p90 = scmp.eq.s32.totalorder %s22, 0
      %p91 = por %p89, %p90
      %s92 = ssub.s32 %s16, %s23
      %p93 = scmp.eq.s32.totalorder %s92, 0
      %s95 = sadd.s32 %s94, 1
      %s96 = scalar_select %p93, %s94, %s95
      %p99 = pneg %p93
      %p100 = scmp.eq.s32.totalorder %s16, 1
      %p101 = por %p99, %p100
      %p102 = scmp.ne.s32.totalorder %s94, %s97
      %p103 = scmp.eq.s32.totalorder %s16, 0
      %p104 = por %p102, %p103
      %p105 = scmp.ne.s32.totalorder %s94, %s97
      %p106 = scmp.eq.s32.totalorder %s21, 1
      %p107 = por %p105, %p106
      %p108 = scmp.ne.s32.totalorder %s97, %s98
      %p109 = scmp.eq.s32.totalorder %s21, 0
      %p110 = por %p108, %p109
      %p111 = scmp.ne.s32.totalorder %s97, %s98
      %p112 = scmp.eq.s32.totalorder %s22, 1
      %p113 = por %p111, %p112
      %p115 = scmp.ne.s32.totalorder %s98, %s114
      %p116 = scmp.eq.s32.totalorder %s22, 0
      %p117 = por %p115, %p116
      %p118 = scmp.le.s32.totalorder 1, %s16
      %p119 = scmp.lt.s32.totalorder %s16, 3
      %p120 = pnand %p118, %p119
      %p121 = pneg %p120
      // Predicated region
      $region9: #{tpu_custom_call.1} parent=5 // pred_check
        _
      $region10: #{tpu_custom_call.1} parent=5 // pred_check_branch
        %123 = sbr.rel (%p120) target = $region12
      $region11: #{tpu_custom_call.1} parent=5 // pred_region
        %s124 = ssub.s32 %s16, 1
        // Predicated region
        $region13: #{tpu_custom_call.1} parent=11 // pred_check
          %p125 = pneg %p63
        $region14: #{tpu_custom_call.1} parent=11 // pred_check_branch
          %127 = sbr.rel (%p125) target = $region16
        $region15: #{tpu_custom_call.1} parent=11 // pred_region
          %129 = vsyncadd [#allocation6], 0
          %s130 = sshll.u32 %s1, 4
          %s131 = int_to_ptr.hbm [resolvable:$true] %s130
          %s132 = sshll.u32 [#allocation5], 4
          %s133 = int_to_ptr.vmem [resolvable:$true] %s132
          %138 = dma.hbm_to_vmem [thread:$0]  %s131, 512, %s133, [#allocation6], 128, 128, 8
        $region16: #{tpu_custom_call.1} parent=11 // pred_fallthru
          _
        // Predicated region
        $region17: #{tpu_custom_call.1} parent=11 // pred_check
          %p139 = pneg %p84
        $region18: #{tpu_custom_call.1} parent=11 // pred_check_branch
          %141 = sbr.rel (%p139) target = $region20
        $region19: #{tpu_custom_call.1} parent=11 // pred_region
          _
        $region20: #{tpu_custom_call.1} parent=11 // pred_fallthru
          _
      $region12: #{tpu_custom_call.1} parent=5 // pred_fallthru
        _
      %p142 = scmp.lt.s32.totalorder %s16, 2
      // Predicated region
      $region21: #{tpu_custom_call.1} parent=5 // pred_check
        %p143 = pneg %p142
      $region22: #{tpu_custom_call.1} parent=5 // pred_check_branch
        %145 = sbr.rel (%p143) target = $region24
      $region23: #{tpu_custom_call.1} parent=5 // pred_region
        // Predicated region
        $region25: #{tpu_custom_call.1} parent=23 // pred_check
          %p146 = pneg %p36
        $region26: #{tpu_custom_call.1} parent=23 // pred_check_branch
          %148 = sbr.rel (%p146) target = $region28
        $region27: #{tpu_custom_call.1} parent=23 // pred_region
          %s149 = sand.u32 %s26, 1
          %s150 = scalar_lea.sflag [#allocation3], %s149
          %s151 = sand.u32 %s26, 1
          %s152 = smul.addr %s151, 8
          %s153 = scalar_lea.vmem [#allocation2], %s152
          %155 = vsyncadd %s150, 0
          %s156 = smul.addr %s16, 8
          %s157 = scalar_lea.hbm %s0, %s156
          %s159 = sshll.u32 %s157, 4
          %s160 = int_to_ptr.hbm [resolvable:$true] %s159
          %s161 = sshll.u32 %s153, 4
          %s162 = int_to_ptr.vmem [resolvable:$true] %s161
          %164 = dma.hbm_to_vmem [thread:$0]  %s160, 128, %s162, %s150
        $region28: #{tpu_custom_call.1} parent=23 // pred_fallthru
          _
      $region24: #{tpu_custom_call.1} parent=5 // pred_fallthru
        _
      %p165 = scmp.le.s32.totalorder 1, %s16
      %p166 = scmp.lt.s32.totalorder %s16, 3
      %p167 = pnand %p165, %p166
      %p168 = pneg %p167
      // Predicated region
      $region29: #{tpu_custom_call.1} parent=5 // pred_check
        _
      $region30: #{tpu_custom_call.1} parent=5 // pred_check_branch
        %170 = sbr.rel (%p167) target = $region32
      $region31: #{tpu_custom_call.1} parent=5 // pred_region
        %s171 = ssub.s32 %s16, 1
        %s172 = sand.u32 %s29, 1
        %s173 = scalar_lea.sflag [#allocation3], %s172
        %s174 = sand.u32 %s29, 1
        %s175 = smul.addr %s174, 8
        %s176 = scalar_lea.vmem [#allocation2], %s175
        // Predicated region
        $region33: #{tpu_custom_call.1} parent=31 // pred_check
          %p177 = pneg %p42
        $region34: #{tpu_custom_call.1} parent=31 // pred_check_branch
          %179 = sbr.rel (%p177) target = $region36
        $region35: #{tpu_custom_call.1} parent=31 // pred_region
          %181 = dma.done %s173, 128
        $region36: #{tpu_custom_call.1} parent=31 // pred_fallthru
          _
        // Predicated region
        $region37: #{tpu_custom_call.1} parent=31 // pred_check
          %p182 = pneg %p63
        $region38: #{tpu_custom_call.1} parent=31 // pred_check_branch
          %184 = sbr.rel (%p182) target = $region40
        $region39: #{tpu_custom_call.1} parent=31 // pred_region
          %186 = dma.done [#allocation6], 512
        $region40: #{tpu_custom_call.1} parent=31 // pred_fallthru
          _
        %s187 = sand.u32 %s29, 1
        %s188 = scalar_lea.sflag [#allocation3], %s187
        %s189 = sand.u32 %s29, 1
        %s190 = smul.addr %s189, 8
        %s191 = scalar_lea.vmem [#allocation2], %s190
        %p192 = pneg %p42
        %p193 = pneg %p39
        %p194 = pneg %p63
        %p195 = pneg %p60
        %p196 = pneg %p84
        %p197 = pneg %p81
        %p198 = pneg %p110
        %p199 = pneg %p107
        %s200 = sand.u32 %s97, 1
        %s201 = scalar_lea.sflag [#allocation4], %s200
        %s202 = sand.u32 %s97, 1
        %s203 = smul.addr %s202, 8
        %s204 = scalar_lea.vmem [#allocation7], %s203
        %v205 = vld [vmem:[%s176] sm:$0xff]
        %v206 = vld [vmem:[#allocation5] sm:$0xff]
        %v207 = vld [vmem:[#allocation5 + $0x8] sm:$0xff]
        %v208 = vld [vmem:[#allocation5 + $0x10] sm:$0xff]
        %v209 = vld [vmem:[#allocation5 + $0x18] sm:$0xff]
        %v210 = vld [vmem:[%s2] sm:$0x1]
        %v212 = vperm.slane %v210, 0
        %vm214 = vcmask 261120
        %v216 = vsel %vm214, %v205, 0
        %218 = vmatpush.msra.mxu0 0.0
        %219 = vmatpush.msra.mxu0 0.0
        %220 = vmatpush.msra.mxu0 0.0
        %221 = vmatpush.msra.mxu0 0.0
        %222 = vmatpush.msra.mxu0 0.0
        %223 = vmatpush.msra.mxu0 0.0
        %224 = vmatpush.msra.mxu0 0.0
        %225 = vmatpush.msra.mxu0 0.0
        %226 = vmatpush.msra.mxu0 0.0
        %227 = vmatpush.msra.mxu0 0.0
        %228 = vmatpush.msra.mxu0 0.0
        %229 = vmatpush.msra.mxu0 0.0
        %230 = vmatpush.msra.mxu0 %v209
        %231 = vmatpush.msra.mxu0 %v208
        %232 = vmatpush.msra.mxu0 %v207
        %233 = vmatpush.msra.mxu0 %v206
        %234 = vmatmul.f32.gmra.mxu0 %v216
        %v235 = vpop.f32.mrf.mxu0
        %v236 = vadd.f32 %v212, %v235
        %237 = vdwg.mxu0
        %v238 = vmul.f32 %v236, %v236
        %239 = vadd.xlane.f32.xlu0 %v238
        %v240 = vpop.xlane.xlu0 %239
        %v241 = vrsqrt.pop %v240
        %v242 = vmul.f32 %v241, %v240
        %v243 = vmul.f32 %v242, %v241
        %v244 = vmul.f32 0.5, %v243
        %v245 = vsub.f32 1.5, %v244
        %v246 = vmul.f32 %v241, %v245
        %v247 = vmul.f32 %v240, %v246
        %vm248 = vcmp.eq.f32.partialorder %v240, inf
        %v249 = vsel %vm248, %v240, %v247
        %vm250 = vcmp.eq.f32.partialorder %v240, 0.0
        %v251 = vand.u32 %v240, 2147483648
        %v252 = vsel %vm250, %v251, %v249
        %v253 = vadd.f32 %v252, 1e-08
        %v254 = vrcp.pop %v253
        %v255 = vmul.f32 %v253, %v254
        %v256 = vsub.f32 1.0, %v255
        %v257 = vmul.f32 %v254, %v256
        %v258 = vadd.f32 %v254, %v257
        %vm259 = vweird.f32 %v253
        %vm260 = vweird.f32 %v254
        %vm261 = vmor %vm259, %vm260
        %v262 = vsel %vm261, %v254, %v258
        %v263 = vand.u32 2147483647, %v253
        %vm264 = vcmp.eq.f32.partialorder %v263, 8.507059e+37
        %v265 = vand.u32 %v253, 2147483648
        %v266 = vor.u32 1.1754944e-38, %v265
        %v267 = vsel %vm264, %v266, %v262
        %v268 = vmul.f32 %v236, %v267
        %269 = vst [vmem:[%s204] sm:$0xff] %v268
        %s270 = sand.u32 %s97, 1
        %s271 = scalar_lea.sflag [#allocation4], %s270
        %s272 = sand.u32 %s97, 1
        %s273 = smul.addr %s272, 8
        %s274 = scalar_lea.vmem [#allocation7], %s273
        // Predicated region
        $region41: #{tpu_custom_call.1} parent=31 // pred_check
          %p275 = pneg %p107
        $region42: #{tpu_custom_call.1} parent=31 // pred_check_branch
          %277 = sbr.rel (%p275) target = $region44
        $region43: #{tpu_custom_call.1} parent=31 // pred_region
          %279 = vsyncadd %s271, 0
          %s280 = smul.addr %s21, 8
          %s281 = scalar_lea.hbm %s3, %s280
          %s283 = sshll.u32 %s274, 4
          %s284 = int_to_ptr.vmem [resolvable:$true] %s283
          %s285 = sshll.u32 %s281, 4
          %s286 = int_to_ptr.hbm [resolvable:$true] %s285
          %288 = dma.vmem_to_hbm [thread:$0]  %s284, 128, %s286, %s271
        $region44: #{tpu_custom_call.1} parent=31 // pred_fallthru
          _
      $region32: #{tpu_custom_call.1} parent=5 // pred_fallthru
        _
      %p289 = scmp.le.s32.totalorder 2, %s16
      // Predicated region
      $region45: #{tpu_custom_call.1} parent=5 // pred_check
        %p290 = pneg %p289
      $region46: #{tpu_custom_call.1} parent=5 // pred_check_branch
        %292 = sbr.rel (%p290) target = $region48
      $region47: #{tpu_custom_call.1} parent=5 // pred_region
        %s293 = ssub.s32 %s16, 2
        // Predicated region
        $region49: #{tpu_custom_call.1} parent=47 // pred_check
          %p294 = pneg %p113
        $region50: #{tpu_custom_call.1} parent=47 // pred_check_branch
          %296 = sbr.rel (%p294) target = $region52
        $region51: #{tpu_custom_call.1} parent=47 // pred_region
          %s297 = sand.u32 %s98, 1
          %s298 = scalar_lea.sflag [#allocation4], %s297
          %s299 = sand.u32 %s98, 1
          %s300 = smul.addr %s299, 8
          %s301 = scalar_lea.vmem [#allocation7], %s300
          %303 = dma.done %s298, 128
        $region52: #{tpu_custom_call.1} parent=47 // pred_fallthru
          _
      $region48: #{tpu_custom_call.1} parent=5 // pred_fallthru
        _
    $region6: #{tpu_custom_call.1} parent=1 // loop_footer
      %s20 = sadd.s32 1, %s16
    $region7: #{tpu_custom_call.1} parent=1 // loop_footer_branch
      %15 = sbr.rel target = $region3
    $region8: #{tpu_custom_call.1} parent=1 // loop_exit
      _
    %304 = vsyncpa [#allocation3], 1
    %s305 = scalar_lea.sflag [#allocation3], 1
    %306 = vsyncpa %s305, 1
    %307 = vsyncpa [#allocation6], 1
    %308 = vsyncpa [#allocation4], 1
    %s309 = scalar_lea.sflag [#allocation4], 1
    %310 = vsyncpa %s309, 1

// kernel: tpu_custom_call.1
$region0: #{tpu_custom_call.1}
  #allocation0 [shape = 'u32[]', space=smem, size = 0x4, offset = 0x4, fixed_abs, tag = 'smem constant byte address 0x4 - core index']
  #allocation1 [shape = 'u32[72,128]{1,0:T(1,128)}', space=vmem, size = 0x9000, scoped, tag = 'internal scratch']
  %s0 = inlined_call_operand.hbm [shape: f32[16,32], index: 0, kind: input, shape index: {}]
  %s1 = inlined_call_operand.hbm [shape: f32[32,128], index: 1, kind: input, shape index: {}]
  %s2 = inlined_call_operand.vmem [shape: f32[1,128], index: 2, kind: input, shape index: {}]
  %s3 = inlined_call_operand.hbm [shape: f32[16,128], index: 3, kind: output, shape index: {}]
  %s4 = sld [smem:[#allocation0]]
  $region53: #{tpu_custom_call.1} parent=0
    _
  %s6 = ssub.s32 1, %s4
  %s7 = scalar_select 0, %s6, %s4
  $region1: #{tpu_custom_call.1} parent=0
    #allocation2 [shape = 'u8[8192]{0}', space=vmem, size = 0x2000, scoped, tag = 'input window, operand 0']
    #allocation3 [shape = 's32[2]{0}', space=sflag, size = 0x8, scoped, tag = 'scoped memory for tpu_custom_call.1']
    #allocation4 [shape = 's32[2]{0}', space=sflag, size = 0x8, scoped, tag = 'scoped memory for tpu_custom_call.1']
    #allocation5 [shape = 'u8[16384]{0}', space=vmem, size = 0x4000, scoped, tag = 'input window, operand 1, single buffered']
    #allocation6 [shape = 's32[1]{0}', space=sflag, size = 0x4, scoped, tag = 'scoped memory for tpu_custom_call.1']
    #allocation7 [shape = 'u8[8192]{0}', space=vmem, size = 0x2000, scoped, tag = 'output window, operand 0']
    %8 = vsyncpa [#allocation3], 0
    %s9 = scalar_lea.sflag [#allocation3], 1
    %10 = vsyncpa %s9, 0
    %11 = vsyncpa [#allocation6], 0
    %12 = vsyncpa [#allocation4], 0
    %s13 = scalar_lea.sflag [#allocation4], 1
    %14 = vsyncpa %s13, 0
    loop: start=0, step=1, limit=4
    $region2: #{tpu_custom_call.1} parent=1 // loop_pre_header
      _
    $region3: #{tpu_custom_call.1} parent=1 // loop_header
      %s16 = sphi 0, %s20
      %p17 = scmp.ge.s32.totalorder %s16, 4
      %s26 = sphi 0, %s28
      %s29 = sphi 0, %s26
      %s30 = sphi 0, %s29
      %s46 = sphi 0, %s30
      %s50 = sphi 0, %s50
      %s52 = sphi 0, %s50
      %s53 = sphi 0, %s52
      %s67 = sphi 0, %s53
      %s71 = sphi 0, %s71
      %s73 = sphi 0, %s71
      %s74 = sphi 0, %s73
      %s88 = sphi 0, %s74
      %s94 = sphi 0, %s96
      %s97 = sphi 0, %s94
      %s98 = sphi 0, %s97
      %s114 = sphi 0, %s98
    $region4: #{tpu_custom_call.1} parent=1 // loop_header_branch
      %19 = sbr.rel (%p17) target = $region8
    $region5: #{tpu_custom_call.1} parent=1 // loop_body
      %s21 = ssub.s32 %s16, 1
      %s22 = ssub.s32 %s16, 2
      %s23 = sadd.s32 %s16, 1
      %s24 = ssub.s32 %s16, %s23
      %p25 = scmp.eq.s32.totalorder %s24, 0
      %s27 = sadd.s32 %s26, 1
      %s28 = scalar_select %p25, %s26, %s27
      %p31 = pneg %p25
      %p32 = scmp.eq.s32.totalorder %s16, 1
      %p33 = por %p31, %p32
      %p34 = scmp.ne.s32.totalorder %s26, %s29
      %p35 = scmp.eq.s32.totalorder %s16, 0
      %p36 = por %p34, %p35
      %p37 = scmp.ne.s32.totalorder %s26, %s29
      %p38 = scmp.eq.s32.totalorder %s21, 1
      %p39 = por %p37, %p38
      %p40 = scmp.ne.s32.totalorder %s29, %s30
      %p41 = scmp.eq.s32.totalorder %s21, 0
      %p42 = por %p40, %p41
      %p43 = scmp.ne.s32.totalorder %s29, %s30
      %p44 = scmp.eq.s32.totalorder %s22, 1
      %p45 = por %p43, %p44
      %p47 = scmp.ne.s32.totalorder %s30, %s46
      %p48 = scmp.eq.s32.totalorder %s22, 0
      %p49 = por %p47, %p48
      %s51 = sadd.s32 %s50, 1
      %p54 = scmp.eq.s32.totalorder %s16, 1
      %p55 = scmp.ne.s32.totalorder %s50, %s52
      %p56 = scmp.eq.s32.totalorder %s16, 0
      %p57 = por %p55, %p56
      %p58 = scmp.ne.s32.totalorder %s50, %s52
      %p59 = scmp.eq.s32.totalorder %s21, 1
      %p60 = por %p58, %p59
      %p61 = scmp.ne.s32.totalorder %s52, %s53
      %p62 = scmp.eq.s32.totalorder %s21, 0
      %p63 = por %p61, %p62
      %p64 = scmp.ne.s32.totalorder %s52, %s53
      %p65 = scmp.eq.s32.totalorder %s22, 1
      %p66 = por %p64, %p65
      %p68 = scmp.ne.s32.totalorder %s53, %s67
      %p69 = scmp.eq.s32.totalorder %s22, 0
      %p70 = por %p68, %p69
      %s72 = sadd.s32 %s71, 1
      %p75 = scmp.eq.s32.totalorder %s16, 1
      %p76 = scmp.ne.s32.totalorder %s71, %s73
      %p77 = scmp.eq.s32.totalorder %s16, 0
      %p78 = por %p76, %p77
      %p79 = scmp.ne.s32.totalorder %s71, %s73
      %p80 = scmp.eq.s32.totalorder %s21, 1
      %p81 = por %p79, %p80
      %p82 = scmp.ne.s32.totalorder %s73, %s74
      %p83 = scmp.eq.s32.totalorder %s21, 0
      %p84 = por %p82, %p83
      %p85 = scmp.ne.s32.totalorder %s73, %s74
      %p86 = scmp.eq.s32.totalorder %s22, 1
      %p87 = por %p85, %p86
      %p89 = scmp.ne.s32.totalorder %s74, %s88
      %p90 = scmp.eq.s32.totalorder %s22, 0
      %p91 = por %p89, %p90
      %s92 = ssub.s32 %s16, %s23
      %p93 = scmp.eq.s32.totalorder %s92, 0
      %s95 = sadd.s32 %s94, 1
      %s96 = scalar_select %p93, %s94, %s95
      %p99 = pneg %p93
      %p100 = scmp.eq.s32.totalorder %s16, 1
      %p101 = por %p99, %p100
      %p102 = scmp.ne.s32.totalorder %s94, %s97
      %p103 = scmp.eq.s32.totalorder %s16, 0
      %p104 = por %p102, %p103
      %p105 = scmp.ne.s32.totalorder %s94, %s97
      %p106 = scmp.eq.s32.totalorder %s21, 1
      %p107 = por %p105, %p106
      %p108 = scmp.ne.s32.totalorder %s97, %s98
      %p109 = scmp.eq.s32.totalorder %s21, 0
      %p110 = por %p108, %p109
      %p111 = scmp.ne.s32.totalorder %s97, %s98
      %p112 = scmp.eq.s32.totalorder %s22, 1
      %p113 = por %p111, %p112
      %p115 = scmp.ne.s32.totalorder %s98, %s114
      %p116 = scmp.eq.s32.totalorder %s22, 0
      %p117 = por %p115, %p116
      %p118 = scmp.le.s32.totalorder 1, %s16
      %p119 = scmp.lt.s32.totalorder %s16, 3
      %p120 = pnand %p118, %p119
      %p121 = pneg %p120
      // Predicated region
      $region9: #{tpu_custom_call.1} parent=5 // pred_check
        _
      $region10: #{tpu_custom_call.1} parent=5 // pred_check_branch
        %123 = sbr.rel (%p120) target = $region12
      $region11: #{tpu_custom_call.1} parent=5 // pred_region
        %s124 = ssub.s32 %s16, 1
        // Predicated region
        $region13: #{tpu_custom_call.1} parent=11 // pred_check
          %p125 = pneg %p63
        $region14: #{tpu_custom_call.1} parent=11 // pred_check_branch
          %127 = sbr.rel (%p125) target = $region16
        $region15: #{tpu_custom_call.1} parent=11 // pred_region
          %129 = vsyncadd [#allocation6], 0
          %s130 = sshll.u32 %s1, 4
          %s131 = int_to_ptr.hbm [resolvable:$true] %s130
          %s132 = sshll.u32 [#allocation5], 4
          %s133 = int_to_ptr.vmem [resolvable:$true] %s132
          %138 = dma.hbm_to_vmem [thread:$0]  %s131, 512, %s133, [#allocation6], 128, 128, 8
        $region16: #{tpu_custom_call.1} parent=11 // pred_fallthru
          _
        // Predicated region
        $region17: #{tpu_custom_call.1} parent=11 // pred_check
          %p139 = pneg %p84
        $region18: #{tpu_custom_call.1} parent=11 // pred_check_branch
          %141 = sbr.rel (%p139) target = $region20
        $region19: #{tpu_custom_call.1} parent=11 // pred_region
          _
        $region20: #{tpu_custom_call.1} parent=11 // pred_fallthru
          _
      $region12: #{tpu_custom_call.1} parent=5 // pred_fallthru
        _
      %p142 = scmp.lt.s32.totalorder %s16, 2
      // Predicated region
      $region21: #{tpu_custom_call.1} parent=5 // pred_check
        %p143 = pneg %p142
      $region22: #{tpu_custom_call.1} parent=5 // pred_check_branch
        %145 = sbr.rel (%p143) target = $region24
      $region23: #{tpu_custom_call.1} parent=5 // pred_region
        // Predicated region
        $region25: #{tpu_custom_call.1} parent=23 // pred_check
          %p146 = pneg %p36
        $region26: #{tpu_custom_call.1} parent=23 // pred_check_branch
          %148 = sbr.rel (%p146) target = $region28
        $region27: #{tpu_custom_call.1} parent=23 // pred_region
          %s149 = sand.u32 %s26, 1
          %s150 = scalar_lea.sflag [#allocation3], %s149
          %s151 = sand.u32 %s26, 1
          %s152 = smul.addr %s151, 8
          %s153 = scalar_lea.vmem [#allocation2], %s152
          %155 = vsyncadd %s150, 0
          %s156 = smul.addr %s16, 8
          %s157 = scalar_lea.hbm %s0, %s156
          %s159 = sshll.u32 %s157, 4
          %s160 = int_to_ptr.hbm [resolvable:$true] %s159
          %s161 = sshll.u32 %s153, 4
          %s162 = int_to_ptr.vmem [resolvable:$true] %s161
          %164 = dma.hbm_to_vmem [thread:$0]  %s160, 128, %s162, %s150
        $region28: #{tpu_custom_call.1} parent=23 // pred_fallthru
          _
      $region24: #{tpu_custom_call.1} parent=5 // pred_fallthru
        _
      %p165 = scmp.le.s32.totalorder 1, %s16
      %p166 = scmp.lt.s32.totalorder %s16, 3
      %p167 = pnand %p165, %p166
      %p168 = pneg %p167
      // Predicated region
      $region29: #{tpu_custom_call.1} parent=5 // pred_check
        _
      $region30: #{tpu_custom_call.1} parent=5 // pred_check_branch
        %170 = sbr.rel (%p167) target = $region32
      $region31: #{tpu_custom_call.1} parent=5 // pred_region
        %s171 = ssub.s32 %s16, 1
        %s172 = sand.u32 %s29, 1
        %s173 = scalar_lea.sflag [#allocation3], %s172
        %s174 = sand.u32 %s29, 1
        %s175 = smul.addr %s174, 8
        %s176 = scalar_lea.vmem [#allocation2], %s175
        // Predicated region
        $region33: #{tpu_custom_call.1} parent=31 // pred_check
          %p177 = pneg %p42
        $region34: #{tpu_custom_call.1} parent=31 // pred_check_branch
          %179 = sbr.rel (%p177) target = $region36
        $region35: #{tpu_custom_call.1} parent=31 // pred_region
          %181 = dma.done %s173, 128
        $region36: #{tpu_custom_call.1} parent=31 // pred_fallthru
          _
        // Predicated region
        $region37: #{tpu_custom_call.1} parent=31 // pred_check
          %p182 = pneg %p63
        $region38: #{tpu_custom_call.1} parent=31 // pred_check_branch
          %184 = sbr.rel (%p182) target = $region40
        $region39: #{tpu_custom_call.1} parent=31 // pred_region
          %186 = dma.done [#allocation6], 512
        $region40: #{tpu_custom_call.1} parent=31 // pred_fallthru
          _
        %s187 = sand.u32 %s29, 1
        %s188 = scalar_lea.sflag [#allocation3], %s187
        %s189 = sand.u32 %s29, 1
        %s190 = smul.addr %s189, 8
        %s191 = scalar_lea.vmem [#allocation2], %s190
        %p192 = pneg %p42
        %p193 = pneg %p39
        %p194 = pneg %p63
        %p195 = pneg %p60
        %p196 = pneg %p84
        %p197 = pneg %p81
        %p198 = pneg %p110
        %p199 = pneg %p107
        %s200 = sand.u32 %s97, 1
        %s201 = scalar_lea.sflag [#allocation4], %s200
        %s202 = sand.u32 %s97, 1
        %s203 = smul.addr %s202, 8
        %s204 = scalar_lea.vmem [#allocation7], %s203
        %v205 = vld [vmem:[%s176] sm:$0xff]
        %v206 = vld [vmem:[#allocation5] sm:$0xff]
        %v207 = vld [vmem:[#allocation5 + $0x8] sm:$0xff]
        %v208 = vld [vmem:[#allocation5 + $0x10] sm:$0xff]
        %v209 = vld [vmem:[#allocation5 + $0x18] sm:$0xff]
        %v210 = vld [vmem:[%s2] sm:$0x1]
        %v212 = vperm.slane %v210, 0
        %vm214 = vcmask 261120
        %v216 = vsel %vm214, %v205, 0
        %218 = vmatpush.msra.mxu0 0.0
        %219 = vmatpush.msra.mxu0 0.0
        %220 = vmatpush.msra.mxu0 0.0
        %221 = vmatpush.msra.mxu0 0.0
        %222 = vmatpush.msra.mxu0 0.0
        %223 = vmatpush.msra.mxu0 0.0
        %224 = vmatpush.msra.mxu0 0.0
        %225 = vmatpush.msra.mxu0 0.0
        %226 = vmatpush.msra.mxu0 0.0
        %227 = vmatpush.msra.mxu0 0.0
        %228 = vmatpush.msra.mxu0 0.0
        %229 = vmatpush.msra.mxu0 0.0
        %230 = vmatpush.msra.mxu0 %v209
        %231 = vmatpush.msra.mxu0 %v208
        %232 = vmatpush.msra.mxu0 %v207
        %233 = vmatpush.msra.mxu0 %v206
        %234 = vmatmul.f32.gmra.mxu0 %v216
        %v235 = vpop.f32.mrf.mxu0
        %v236 = vadd.f32 %v212, %v235
        %237 = vdwg.mxu0
        %v238 = vmul.f32 %v236, %v236
        %239 = vadd.xlane.f32.xlu0 %v238
        %v240 = vpop.xlane.xlu0 %239
        %v241 = vrsqrt.pop %v240
        %v242 = vmul.f32 %v241, %v240
        %v243 = vmul.f32 %v242, %v241
        %v244 = vmul.f32 0.5, %v243
        %v245 = vsub.f32 1.5, %v244
        %v246 = vmul.f32 %v241, %v245
        %v247 = vmul.f32 %v240, %v246
        %vm248 = vcmp.eq.f32.partialorder %v240, inf
        %v249 = vsel %vm248, %v240, %v247
        %vm250 = vcmp.eq.f32.partialorder %v240, 0.0
        %v251 = vand.u32 %v240, 2147483648
        %v252 = vsel %vm250, %v251, %v249
        %v253 = vadd.f32 %v252, 1e-08
        %v254 = vrcp.pop %v253
        %v255 = vmul.f32 %v253, %v254
        %v256 = vsub.f32 1.0, %v255
        %v257 = vmul.f32 %v254, %v256
        %v258 = vadd.f32 %v254, %v257
        %vm259 = vweird.f32 %v253
        %vm260 = vweird.f32 %v254
        %vm261 = vmor %vm259, %vm260
        %v262 = vsel %vm261, %v254, %v258
        %v263 = vand.u32 2147483647, %v253
        %vm264 = vcmp.eq.f32.partialorder %v263, 8.507059e+37
        %v265 = vand.u32 %v253, 2147483648
        %v266 = vor.u32 1.1754944e-38, %v265
        %v267 = vsel %vm264, %v266, %v262
        %v268 = vmul.f32 %v236, %v267
        %269 = vst [vmem:[%s204] sm:$0xff] %v268
        %s270 = sand.u32 %s97, 1
        %s271 = scalar_lea.sflag [#allocation4], %s270
        %s272 = sand.u32 %s97, 1
        %s273 = smul.addr %s272, 8
        %s274 = scalar_lea.vmem [#allocation7], %s273
        // Predicated region
        $region41: #{tpu_custom_call.1} parent=31 // pred_check
          %p275 = pneg %p107
        $region42: #{tpu_custom_call.1} parent=31 // pred_check_branch
          %277 = sbr.rel (%p275) target = $region44
        $region43: #{tpu_custom_call.1} parent=31 // pred_region
          %279 = vsyncadd %s271, 0
          %s280 = smul.addr %s21, 8
          %s281 = scalar_lea.hbm %s3, %s280
          %s283 = sshll.u32 %s274, 4
          %s284 = int_to_ptr.vmem [resolvable:$true] %s283
          %s285 = sshll.u32 %s281, 4
          %s286 = int_to_ptr.hbm [resolvable:$true] %s285
          %288 = dma.vmem_to_hbm [thread:$0]  %s284, 128, %s286, %s271
        $region44: #{tpu_custom_call.1} parent=31 // pred_fallthru
          _
      $region32: #{tpu_custom_call.1} parent=5 // pred_fallthru
        _
      %p289 = scmp.le.s32.totalorder 2, %s16
      // Predicated region
      $region45: #{tpu_custom_call.1} parent=5 // pred_check
        %p290 = pneg %p289
      $region46: #{tpu_custom_call.1} parent=5 // pred_check_branch
        %292 = sbr.rel (%p290) target = $region48
      $region47: #{tpu_custom_call.1} parent=5 // pred_region
        %s293 = ssub.s32 %s16, 2
        // Predicated region
        $region49: #{tpu_custom_call.1} parent=47 // pred_check
          %p294 = pneg %p113
        $region50: #{tpu_custom_call.1} parent=47 // pred_check_branch
          %296 = sbr.rel (%p294) target = $region52
        $region51: #{tpu_custom_call.1} parent=47 // pred_region
          %s297 = sand.u32 %s98, 1
          %s298 = scalar_lea.sflag [#allocation4], %s297
          %s299 = sand.u32 %s98, 1
          %s300 = smul.addr %s299, 8
          %s301 = scalar_lea.vmem [#allocation7], %s300
          %303 = dma.done %s298, 128
        $region52: #{tpu_custom_call.1} parent=47 // pred_fallthru
          _
      $region48: #{tpu_custom_call.1} parent=5 // pred_fallthru
        _
    $region6: #{tpu_custom_call.1} parent=1 // loop_footer
      %s20 = sadd.s32 1, %s16
    $region7: #{tpu_custom_call.1} parent=1 // loop_footer_branch
      %15 = sbr.rel target = $region3
    $region8: #{tpu_custom_call.1} parent=1 // loop_exit
      _
    %304 = vsyncpa [#allocation3], 1
    %s305 = scalar_lea.sflag [#allocation3], 1
    %306 = vsyncpa %s305, 1
    %307 = vsyncpa [#allocation6], 1
    %308 = vsyncpa [#allocation4], 1
    %s309 = scalar_lea.sflag [#allocation4], 1
    %310 = vsyncpa %s309, 1

</llo_original>
